<compile_context>
chip_gen: v7x
topology: tpu7x:2x2x1
jax: 0.10.0
libtpu: 0.0.40
codegen_flags: <defaults>
</compile_context>

<pallas_src>
import functools

import numpy as np
import jax
import jax.numpy as jnp
from jax.experimental import pallas as pl
from jax.experimental.pallas import tpu as pltpu


def _char_cnn_highway_kernel(x_ref, w_all_ref, b_conv_ref, w_hw_ref, b_hw_ref,
                             out_ref, *, k, f, t_valid):
    """One grid step = n_tile words.

    x_ref   : (l_pad * n_tile, C)  position-major rows: row = t * n_tile + word
    w_all   : (C, K*F)             fused conv weight, column block kk = tap kk
    out_ref : (n_tile, F)
    """
    n_tile = out_ref.shape[0]
    rows = t_valid * n_tile                      # rows holding valid conv positions

    # ---- Conv1d (valid): ALL K taps in a single MXU pass ----
    y = jnp.dot(x_ref[...], w_all_ref[...],
                preferred_element_type=jnp.float32)          # (l_pad*n_tile, K*F) f32

    # ---- combine taps on the output side with 8-aligned static row slices ----
    # conv position t of word n lives at rows t*n_tile + n; tap kk contributes
    # y[(t+kk)*n_tile + n, kk*F:(kk+1)*F].  All starts/lengths are multiples of 8.
    conv = y[0:rows, 0:f]
    for kk in range(1, k):
        conv = conv + y[kk * n_tile:kk * n_tile + rows, kk * f:(kk + 1) * f]
    conv = conv + b_conv_ref[...]                             # (rows, F)

    # ---- max over time: T aligned row-groups, then ReLU (monotone wrt max) ----
    pooled = conv[0:n_tile, :]
    for tt in range(1, t_valid):
        pooled = jnp.maximum(pooled, conv[tt * n_tile:(tt + 1) * n_tile, :])
    pooled = jnp.maximum(pooled, 0.0)                         # (n_tile, F)

    # ---- Highway: projection + gate fused into one (F, 2F) matmul (f32, tiny) ----
    hw = jnp.dot(pooled, w_hw_ref[...],
                 preferred_element_type=jnp.float32) + b_hw_ref[...]   # (n_tile, 2F)
    proj = jnp.maximum(hw[:, :f], 0.0)
    gate = jax.nn.sigmoid(hw[:, f:])
    out_ref[...] = (gate * proj + (1.0 - gate) * pooled).astype(out_ref.dtype)


def char_cnn_highway(x, w_conv, b_conv, w_proj, b_proj, w_gate, b_gate,
                     *, n_tile=None, mxu_dtype=jnp.bfloat16):
    """x: (N, C, L) float32 (PyTorch Conv1d NCW layout). Returns (N, F) float32."""
    n, c, l = x.shape
    f, _, k = w_conv.shape
    out_dtype = jnp.float32

    l_pad = pl.cdiv(l, 8) * 8                    # 21 -> 24 : sublane-aligned word slots
    t_valid = l - k + 1                          # valid conv positions per word

    if n_tile is None:
        # >= 2 grid steps when possible (keeps both v7x TensorCores busy); 256-word cap
        # keeps the f32 temporaries comfortably inside v7x's 64 MiB VMEM.  For large N on
        # v5e/v6e a sweep up to 512-1024 words/tile is worthwhile (pass n_tile=...).
        n_tile = max(8, min(256, pl.cdiv(pl.cdiv(n, 2), 8) * 8))
    assert n_tile % 8 == 0
    n_pad = pl.cdiv(n, n_tile) * n_tile
    n_blocks = n_pad // n_tile

    # ---- layout prep (pure XLA glue, no math) ----
    x_wmc = jnp.transpose(x, (0, 2, 1))                          # (N, L, C)
    x_wmc = jnp.pad(x_wmc, ((0, n_pad - n), (0, l_pad - l), (0, 0)))
    # position-major inside each block: row = block*(l_pad*n_tile) + t*n_tile + word
    x_slab = (x_wmc.reshape(n_blocks, n_tile, l_pad, c)
              .transpose(0, 2, 1, 3)
              .reshape(n_blocks * l_pad * n_tile, c))

    # fused conv weight: W_all[c, kk*F + f] = w_conv[f, c, kk]
    w_all = jnp.transpose(w_conv, (1, 2, 0)).reshape(c, k * f)            # (C, K*F)
    # fused highway weight / bias (torch x @ W^T + b == x @ Wt + b)
    w_hw = jnp.concatenate([w_proj.T, w_gate.T], axis=1).astype(jnp.float32)   # (F, 2F)
    b_hw = jnp.concatenate([b_proj, b_gate]).astype(jnp.float32).reshape(1, 2 * f)

    if mxu_dtype is not None:                    # bf16 MXU inputs, f32 accumulation
        x_slab = x_slab.astype(mxu_dtype)
        w_all = w_all.astype(mxu_dtype)

    kernel = functools.partial(_char_cnn_highway_kernel, k=k, f=f, t_valid=t_valid)

    # VMEM budget derived from actual buffer sizes (input double-buffered + f32 temporaries).
    lane = lambda d: pl.cdiv(d, 128) * 128
    in_bytes = n_tile * l_pad * lane(c) * x_slab.dtype.itemsize
    y_bytes = n_tile * l_pad * lane(k * f) * 4
    conv_bytes = t_valid * n_tile * lane(f) * 4
    out_bytes = n_tile * lane(f) * 4
    w_bytes = (pl.cdiv(c, 8) * 8 * lane(k * f) + f * lane(2 * f) + 4 * lane(2 * f)) * 4
    est = 2 * in_bytes + y_bytes + 2 * conv_bytes + 2 * out_bytes + w_bytes
    vmem_limit = int(min(64 * 2 ** 20, max(32 * 2 ** 20, 2 * est)))

    cost = pl.CostEstimate(
        flops=int(2 * n_pad * l_pad * c * k * f + 2 * n_pad * f * 2 * f),
        transcendentals=int(n_pad * f),                      # sigmoid
        bytes_accessed=int(x_slab.size * x_slab.dtype.itemsize
                           + w_all.size * w_all.dtype.itemsize
                           + (w_hw.size + b_hw.size + f) * 4
                           + n_pad * f * 4),
    )

    out = pl.pallas_call(
        kernel,
        out_shape=jax.ShapeDtypeStruct((n_pad, f), out_dtype),
        grid_spec=pltpu.PrefetchScalarGridSpec(
            num_scalar_prefetch=0,
            grid=(n_blocks,),
            in_specs=[
                pl.BlockSpec((l_pad * n_tile, c), lambda i: (i, 0)),  # word block (slab rows)
                pl.BlockSpec((c, k * f), lambda i: (0, 0)),           # fused conv weight
                pl.BlockSpec((1, f), lambda i: (0, 0)),               # conv bias
                pl.BlockSpec((f, 2 * f), lambda i: (0, 0)),           # fused highway weight
                pl.BlockSpec((1, 2 * f), lambda i: (0, 0)),           # fused highway bias
            ],
            out_specs=pl.BlockSpec((n_tile, f), lambda i: (i, 0)),
        ),
        compiler_params=pltpu.CompilerParams(
            dimension_semantics=("parallel",),
            vmem_limit_bytes=vmem_limit),
        cost_estimate=cost,
    )(x_slab, w_all, b_conv.astype(jnp.float32).reshape(1, f), w_hw, b_hw)
    return out[:n]


def model_embeddings_forward(char_indices, params, *, embed_size, char_embed_size,
                             max_word_length, n_tile=None, mxu_dtype=jnp.bfloat16):
    """input : (sentence_length, batch_size, max_word_length) int32 char ids
       output: (sentence_length, batch_size, embed_size) float32"""
    s, b, _ = char_indices.shape
    # Character embedding lookup (XLA glue; see TODO at top about why it is not fused).
    char_embeds = jnp.take(params["char_emb"], char_indices, axis=0)        # (S, B, L, C)
    # Spec-faithful: the PyTorch module does a raw reshape (no transpose) here.
    x = char_embeds.reshape(s * b, char_embed_size, max_word_length)        # (N, C, L)
    out = char_cnn_highway(x, params["w_conv"], params["b_conv"],
                           params["w_proj"], params["b_proj"],
                           params["w_gate"], params["b_gate"],
                           n_tile=n_tile, mxu_dtype=mxu_dtype)
    # TODO(synk): training-mode dropout (p=0.3) is stochastic; eval-mode identity here.
    return out.reshape(s, b, embed_size)


def reference_forward(char_indices, params, *, embed_size, char_embed_size,
                      max_word_length, kernel_size):
    """Pure-JAX reference for validation (same spec semantics)."""
    s, b, _ = char_indices.shape
    emb = jnp.take(params["char_emb"], char_indices, axis=0)
    x = emb.reshape(s * b, char_embed_size, max_word_length)
    t = max_word_length - kernel_size + 1
    conv = jnp.stack([
        jnp.einsum('ncl,fcl->nf', x[:, :, tt:tt + kernel_size], params["w_conv"],
                   precision=jax.lax.Precision.HIGHEST)
        for tt in range(t)], axis=-1) + params["b_conv"][None, :, None]
    pooled = jnp.max(jnp.maximum(conv, 0.0), axis=-1)                       # (N, F)
    proj = jnp.maximum(pooled @ params["w_proj"].T + params["b_proj"], 0.0)
    gate = jax.nn.sigmoid(pooled @ params["w_gate"].T + params["b_gate"])
    out = gate * proj + (1.0 - gate) * pooled
    return out.reshape(s, b, embed_size)


if __name__ == "__main__":
    embed_size = 32
    char_embed_size = 50     # module default
    max_word_length = 21     # module default
    kernel_size = 5          # CNN kernel width (CS224n a5 CNN)
    vocab_size = 30
    pad_idx = 0
    S, B = 8, 2

    key = jax.random.PRNGKey(0)
    k_emb, k_wc, k_bc, k_wp, k_bp, k_wg, k_bg, k_in = jax.random.split(key, 8)

    char_emb = jax.random.normal(k_emb, (vocab_size, char_embed_size), jnp.float32) * 0.1
    char_emb = char_emb.at[pad_idx].set(0.0)   # nn.Embedding padding_idx row is zero
    params = dict(
        char_emb=char_emb,
        w_conv=jax.random.normal(k_wc, (embed_size, char_embed_size, kernel_size), jnp.float32) * 0.1,
        b_conv=jax.random.normal(k_bc, (embed_size,), jnp.float32) * 0.1,
        w_proj=jax.random.normal(k_wp, (embed_size, embed_size), jnp.float32) * 0.1,
        b_proj=jax.random.normal(k_bp, (embed_size,), jnp.float32) * 0.1,
        w_gate=jax.random.normal(k_wg, (embed_size, embed_size), jnp.float32) * 0.1,
        b_gate=jax.random.normal(k_bg, (embed_size,), jnp.float32) * 0.1,
    )

    char_indices = jax.random.randint(k_in, (S, B, max_word_length), 0, vocab_size, jnp.int32)

    ref = reference_forward(char_indices, params,
                            embed_size=embed_size,
                            char_embed_size=char_embed_size,
                            max_word_length=max_word_length,
                            kernel_size=kernel_size)

    # default path: bf16 MXU inputs, f32 accumulation
    out_bf16 = model_embeddings_forward(char_indices, params,
                                        embed_size=embed_size,
                                        char_embed_size=char_embed_size,
                                        max_word_length=max_word_length)
    out_bf16 = jax.block_until_ready(out_bf16)
    assert out_bf16.shape == (S, B, embed_size)
    np.testing.assert_allclose(np.asarray(out_bf16), np.asarray(ref), rtol=2.5e-2, atol=2.5e-2)

    # full-f32 MXU path (tighter tolerance)
    out_f32 = model_embeddings_forward(char_indices, params,
                                       embed_size=embed_size,
                                       char_embed_size=char_embed_size,
                                       max_word_length=max_word_length,
                                       mxu_dtype=None)
    out_f32 = jax.block_until_ready(out_f32)
    np.testing.assert_allclose(np.asarray(out_f32), np.asarray(ref), rtol=1e-2, atol=1e-2)

    print("KERNEL_OK")
</pallas_src>

<mosaic_0001>
module attributes {stable_mosaic.version = 11 : i64} {
  func.func @_char_cnn_highway_kernel(%arg0: i32, %arg1: memref<192x50xbf16, #tpu.memory_space<vmem>>, %arg2: memref<50x160xbf16, #tpu.memory_space<vmem>>, %arg3: memref<1x32xf32, #tpu.memory_space<vmem>>, %arg4: memref<32x64xf32, #tpu.memory_space<vmem>>, %arg5: memref<1x64xf32, #tpu.memory_space<vmem>>, %arg6: memref<8x32xf32, #tpu.memory_space<vmem>>) attributes {dimension_semantics = [#tpu.dimension_semantics<parallel>], iteration_bounds = array<i64: 2>, scalar_prefetch = 0 : i64, scratch_operands = 0 : i64, tpu.core_type = #tpu.core_type<tc>, window_params = [{transform_indices = @transform_0, window_bounds = array<i64: 192, 50>}, {pipeline_mode = #tpu.pipeline_mode<synchronous>, transform_indices = @transform_1, window_bounds = array<i64: 50, 160>}, {pipeline_mode = #tpu.pipeline_mode<synchronous>, transform_indices = @transform_2, window_bounds = array<i64: 1, 32>}, {pipeline_mode = #tpu.pipeline_mode<synchronous>, transform_indices = @transform_3, window_bounds = array<i64: 32, 64>}, {pipeline_mode = #tpu.pipeline_mode<synchronous>, transform_indices = @transform_4, window_bounds = array<i64: 1, 64>}, {transform_indices = @transform_5, window_bounds = array<i64: 8, 32>}]} {
    %c0 = arith.constant 0 : index
    %c0_0 = arith.constant 0 : index
    %0 = vector.load %arg1[%c0, %c0_0] : memref<192x50xbf16, #tpu.memory_space<vmem>>, vector<192x50xbf16>
    %c0_1 = arith.constant 0 : index
    %c0_2 = arith.constant 0 : index
    %1 = vector.load %arg2[%c0_1, %c0_2] : memref<50x160xbf16, #tpu.memory_space<vmem>>, vector<50x160xbf16>
    %cst = arith.constant dense<0.000000e+00> : vector<192x160xf32>
    %2 = tpu.matmul %0, %1, %cst {dimension_numbers = #tpu.dot_dimension_numbers<[1], [0], [0], [1], [0, 0, 1, 1], [], []>} : vector<192x50xbf16>, vector<50x160xbf16>, vector<192x160xf32> -> vector<192x160xf32>
    %3 = vector.extract_strided_slice %2 {offsets = [0, 0], sizes = [136, 32], strides = [1, 1]} : vector<192x160xf32> to vector<136x32xf32>
    %4 = vector.extract_strided_slice %2 {offsets = [8, 32], sizes = [136, 32], strides = [1, 1]} : vector<192x160xf32> to vector<136x32xf32>
    %5 = arith.addf %3, %4 : vector<136x32xf32>
    %6 = vector.extract_strided_slice %2 {offsets = [16, 64], sizes = [136, 32], strides = [1, 1]} : vector<192x160xf32> to vector<136x32xf32>
    %7 = arith.addf %5, %6 : vector<136x32xf32>
    %8 = vector.extract_strided_slice %2 {offsets = [24, 96], sizes = [136, 32], strides = [1, 1]} : vector<192x160xf32> to vector<136x32xf32>
    %9 = arith.addf %7, %8 : vector<136x32xf32>
    %10 = vector.extract_strided_slice %2 {offsets = [32, 128], sizes = [136, 32], strides = [1, 1]} : vector<192x160xf32> to vector<136x32xf32>
    %11 = arith.addf %9, %10 : vector<136x32xf32>
    %c0_3 = arith.constant 0 : index
    %c0_4 = arith.constant 0 : index
    %12 = vector.load %arg3[%c0_3, %c0_4] : memref<1x32xf32, #tpu.memory_space<vmem>>, vector<1x32xf32>
    %13 = vector.broadcast %12 : vector<1x32xf32> to vector<136x32xf32>
    %14 = arith.addf %11, %13 : vector<136x32xf32>
    %15 = vector.extract_strided_slice %14 {offsets = [0, 0], sizes = [8, 32], strides = [1, 1]} : vector<136x32xf32> to vector<8x32xf32>
    %16 = vector.extract_strided_slice %14 {offsets = [8, 0], sizes = [8, 32], strides = [1, 1]} : vector<136x32xf32> to vector<8x32xf32>
    %17 = arith.maximumf %15, %16 : vector<8x32xf32>
    %18 = vector.extract_strided_slice %14 {offsets = [16, 0], sizes = [8, 32], strides = [1, 1]} : vector<136x32xf32> to vector<8x32xf32>
    %19 = arith.maximumf %17, %18 : vector<8x32xf32>
    %20 = vector.extract_strided_slice %14 {offsets = [24, 0], sizes = [8, 32], strides = [1, 1]} : vector<136x32xf32> to vector<8x32xf32>
    %21 = arith.maximumf %19, %20 : vector<8x32xf32>
    %22 = vector.extract_strided_slice %14 {offsets = [32, 0], sizes = [8, 32], strides = [1, 1]} : vector<136x32xf32> to vector<8x32xf32>
    %23 = arith.maximumf %21, %22 : vector<8x32xf32>
    %24 = vector.extract_strided_slice %14 {offsets = [40, 0], sizes = [8, 32], strides = [1, 1]} : vector<136x32xf32> to vector<8x32xf32>
    %25 = arith.maximumf %23, %24 : vector<8x32xf32>
    %26 = vector.extract_strided_slice %14 {offsets = [48, 0], sizes = [8, 32], strides = [1, 1]} : vector<136x32xf32> to vector<8x32xf32>
    %27 = arith.maximumf %25, %26 : vector<8x32xf32>
    %28 = vector.extract_strided_slice %14 {offsets = [56, 0], sizes = [8, 32], strides = [1, 1]} : vector<136x32xf32> to vector<8x32xf32>
    %29 = arith.maximumf %27, %28 : vector<8x32xf32>
    %30 = vector.extract_strided_slice %14 {offsets = [64, 0], sizes = [8, 32], strides = [1, 1]} : vector<136x32xf32> to vector<8x32xf32>
    %31 = arith.maximumf %29, %30 : vector<8x32xf32>
    %32 = vector.extract_strided_slice %14 {offsets = [72, 0], sizes = [8, 32], strides = [1, 1]} : vector<136x32xf32> to vector<8x32xf32>
    %33 = arith.maximumf %31, %32 : vector<8x32xf32>
    %34 = vector.extract_strided_slice %14 {offsets = [80, 0], sizes = [8, 32], strides = [1, 1]} : vector<136x32xf32> to vector<8x32xf32>
    %35 = arith.maximumf %33, %34 : vector<8x32xf32>
    %36 = vector.extract_strided_slice %14 {offsets = [88, 0], sizes = [8, 32], strides = [1, 1]} : vector<136x32xf32> to vector<8x32xf32>
    %37 = arith.maximumf %35, %36 : vector<8x32xf32>
    %38 = vector.extract_strided_slice %14 {offsets = [96, 0], sizes = [8, 32], strides = [1, 1]} : vector<136x32xf32> to vector<8x32xf32>
    %39 = arith.maximumf %37, %38 : vector<8x32xf32>
    %40 = vector.extract_strided_slice %14 {offsets = [104, 0], sizes = [8, 32], strides = [1, 1]} : vector<136x32xf32> to vector<8x32xf32>
    %41 = arith.maximumf %39, %40 : vector<8x32xf32>
    %42 = vector.extract_strided_slice %14 {offsets = [112, 0], sizes = [8, 32], strides = [1, 1]} : vector<136x32xf32> to vector<8x32xf32>
    %43 = arith.maximumf %41, %42 : vector<8x32xf32>
    %44 = vector.extract_strided_slice %14 {offsets = [120, 0], sizes = [8, 32], strides = [1, 1]} : vector<136x32xf32> to vector<8x32xf32>
    %45 = arith.maximumf %43, %44 : vector<8x32xf32>
    %46 = vector.extract_strided_slice %14 {offsets = [128, 0], sizes = [8, 32], strides = [1, 1]} : vector<136x32xf32> to vector<8x32xf32>
    %47 = arith.maximumf %45, %46 : vector<8x32xf32>
    %cst_5 = arith.constant 0.000000e+00 : f32
    %48 = vector.broadcast %cst_5 : f32 to vector<8x32xf32>
    %49 = arith.maximumf %47, %48 : vector<8x32xf32>
    %c0_6 = arith.constant 0 : index
    %c0_7 = arith.constant 0 : index
    %50 = vector.load %arg4[%c0_6, %c0_7] : memref<32x64xf32, #tpu.memory_space<vmem>>, vector<32x64xf32>
    %cst_8 = arith.constant dense<0.000000e+00> : vector<8x64xf32>
    %51 = tpu.matmul %49, %50, %cst_8 {dimension_numbers = #tpu.dot_dimension_numbers<[1], [0], [0], [1], [0, 0, 1, 1], [], []>} : vector<8x32xf32>, vector<32x64xf32>, vector<8x64xf32> -> vector<8x64xf32>
    %c0_9 = arith.constant 0 : index
    %c0_10 = arith.constant 0 : index
    %52 = vector.load %arg5[%c0_9, %c0_10] : memref<1x64xf32, #tpu.memory_space<vmem>>, vector<1x64xf32>
    %53 = vector.broadcast %52 : vector<1x64xf32> to vector<8x64xf32>
    %54 = arith.addf %51, %53 : vector<8x64xf32>
    %55 = vector.extract_strided_slice %54 {offsets = [0, 0], sizes = [8, 32], strides = [1, 1]} : vector<8x64xf32> to vector<8x32xf32>
    %cst_11 = arith.constant 0.000000e+00 : f32
    %56 = vector.broadcast %cst_11 : f32 to vector<8x32xf32>
    %57 = arith.maximumf %55, %56 : vector<8x32xf32>
    %58 = vector.extract_strided_slice %54 {offsets = [0, 32], sizes = [8, 32], strides = [1, 1]} : vector<8x64xf32> to vector<8x32xf32>
    %59 = arith.negf %58 : vector<8x32xf32>
    %60 = math.exp %59 : vector<8x32xf32>
    %cst_12 = arith.constant 1.000000e+00 : f32
    %61 = vector.broadcast %cst_12 : f32 to vector<8x32xf32>
    %62 = arith.addf %61, %60 : vector<8x32xf32>
    %63 = arith.divf %61, %62 : vector<8x32xf32>
    %64 = arith.mulf %63, %57 : vector<8x32xf32>
    %cst_13 = arith.constant 1.000000e+00 : f32
    %65 = vector.broadcast %cst_13 : f32 to vector<8x32xf32>
    %66 = arith.subf %65, %63 : vector<8x32xf32>
    %67 = arith.mulf %66, %49 : vector<8x32xf32>
    %68 = arith.addf %64, %67 : vector<8x32xf32>
    %c0_14 = arith.constant 0 : index
    %c0_15 = arith.constant 0 : index
    %69 = vector.load %arg6[%c0_14, %c0_15] : memref<8x32xf32, #tpu.memory_space<vmem>>, vector<8x32xf32>
    tpu.vector_store %arg6[%c0_14, %c0_15], %68 {strides = array<i32>} : memref<8x32xf32, #tpu.memory_space<vmem>>, vector<8x32xf32>,
    return
  }
  func.func @transform_0(%arg0: i32) -> (i32, i32) {
    %c0_i32 = arith.constant 0 : i32
    %c0_i32_0 = arith.constant 0 : i32
    return %arg0, %c0_i32 : i32, i32
  }
  func.func @transform_1(%arg0: i32) -> (i32, i32) {
    %c0_i32 = arith.constant 0 : i32
    %c0_i32_0 = arith.constant 0 : i32
    %c0_i32_1 = arith.constant 0 : i32
    return %c0_i32, %c0_i32_0 : i32, i32
  }
  func.func @transform_2(%arg0: i32) -> (i32, i32) {
    %c0_i32 = arith.constant 0 : i32
    %c0_i32_0 = arith.constant 0 : i32
    %c0_i32_1 = arith.constant 0 : i32
    return %c0_i32, %c0_i32_0 : i32, i32
  }
  func.func @transform_3(%arg0: i32) -> (i32, i32) {
    %c0_i32 = arith.constant 0 : i32
    %c0_i32_0 = arith.constant 0 : i32
    %c0_i32_1 = arith.constant 0 : i32
    return %c0_i32, %c0_i32_0 : i32, i32
  }
  func.func @transform_4(%arg0: i32) -> (i32, i32) {
    %c0_i32 = arith.constant 0 : i32
    %c0_i32_0 = arith.constant 0 : i32
    %c0_i32_1 = arith.constant 0 : i32
    return %c0_i32, %c0_i32_0 : i32, i32
  }
  func.func @transform_5(%arg0: i32) -> (i32, i32) {
    %c0_i32 = arith.constant 0 : i32
    %c0_i32_0 = arith.constant 0 : i32
    return %arg0, %c0_i32 : i32, i32
  }
}

</mosaic_0001>

<llo_original>
// kernel: tpu_custom_call.1
$region0: #{tpu_custom_call.1}
  #allocation0 [shape = 'u32[]', space=smem, size = 0x4, offset = 0x4, fixed_abs, tag = 'smem constant byte address 0x4 - core index']
  #allocation1 [shape = 'u32[144,128]{1,0:T(1,128)}', space=vmem, size = 0x12000, scoped, tag = 'internal scratch']
  %s0 = inlined_call_operand.vmem [shape: bf16[384,50], index: 0, kind: input, shape index: {}]
  %s1 = inlined_call_operand.vmem [shape: bf16[50,160], index: 1, kind: input, shape index: {}]
  %s2 = inlined_call_operand.vmem [shape: f32[1,32], index: 2, kind: input, shape index: {}]
  %s3 = inlined_call_operand.vmem [shape: f32[32,64], index: 3, kind: input, shape index: {}]
  %s4 = inlined_call_operand.vmem [shape: f32[1,64], index: 4, kind: input, shape index: {}]
  %s5 = inlined_call_operand.hbm [shape: f32[16,32], index: 5, kind: output, shape index: {}]
  %s6 = sld [smem:[#allocation0]]
  $region53: #{tpu_custom_call.1} parent=0
    _
  %s8 = ssub.s32 1, %s6
  %s9 = scalar_select 0, %s8, %s6
  $region1: #{tpu_custom_call.1} parent=0
    #allocation2 [shape = 'u8[8192]{0}', space=vmem, size = 0x2000, scoped, tag = 'output window, operand 0']
    #allocation3 [shape = 's32[2]{0}', space=sflag, size = 0x8, scoped, tag = 'scoped memory for tpu_custom_call.1']
    %10 = vsyncpa [#allocation3], 0
    %s11 = scalar_lea.sflag [#allocation3], 1
    %12 = vsyncpa %s11, 0
    loop: start=0, step=1, limit=4
    $region2: #{tpu_custom_call.1} parent=1 // loop_pre_header
      _
    $region3: #{tpu_custom_call.1} parent=1 // loop_header
      %s14 = sphi 0, %s18
      %p15 = scmp.ge.s32.totalorder %s14, 4
      %s24 = sphi 0, %s26
      %s27 = sphi 0, %s24
      %s28 = sphi 0, %s27
      %s44 = sphi 0, %s28
      %s48 = sphi 0, %s48
      %s50 = sphi 0, %s48
      %s51 = sphi 0, %s50
      %s65 = sphi 0, %s51
      %s69 = sphi 0, %s69
      %s71 = sphi 0, %s69
      %s72 = sphi 0, %s71
      %s86 = sphi 0, %s72
      %s90 = sphi 0, %s90
      %s92 = sphi 0, %s90
      %s93 = sphi 0, %s92
      %s107 = sphi 0, %s93
      %s111 = sphi 0, %s111
      %s113 = sphi 0, %s111
      %s114 = sphi 0, %s113
      %s128 = sphi 0, %s114
      %s134 = sphi 0, %s136
      %s137 = sphi 0, %s134
      %s138 = sphi 0, %s137
      %s154 = sphi 0, %s138
    $region4: #{tpu_custom_call.1} parent=1 // loop_header_branch
      %17 = sbr.rel (%p15) target = $region8
    $region5: #{tpu_custom_call.1} parent=1 // loop_body
      %s19 = ssub.s32 %s14, 1
      %s20 = ssub.s32 %s14, 2
      %s21 = sadd.s32 %s14, 1
      %s22 = ssub.s32 %s14, %s21
      %p23 = scmp.eq.s32.totalorder %s22, 0
      %s25 = sadd.s32 %s24, 1
      %s26 = scalar_select %p23, %s24, %s25
      %p29 = pneg %p23
      %p30 = scmp.eq.s32.totalorder %s14, 1
      %p31 = por %p29, %p30
      %p32 = scmp.ne.s32.totalorder %s24, %s27
      %p33 = scmp.eq.s32.totalorder %s14, 0
      %p34 = por %p32, %p33
      %p35 = scmp.ne.s32.totalorder %s24, %s27
      %p36 = scmp.eq.s32.totalorder %s19, 1
      %p37 = por %p35, %p36
      %p38 = scmp.ne.s32.totalorder %s27, %s28
      %p39 = scmp.eq.s32.totalorder %s19, 0
      %p40 = por %p38, %p39
      %p41 = scmp.ne.s32.totalorder %s27, %s28
      %p42 = scmp.eq.s32.totalorder %s20, 1
      %p43 = por %p41, %p42
      %p45 = scmp.ne.s32.totalorder %s28, %s44
      %p46 = scmp.eq.s32.totalorder %s20, 0
      %p47 = por %p45, %p46
      %s49 = sadd.s32 %s48, 1
      %p52 = scmp.eq.s32.totalorder %s14, 1
      %p53 = scmp.ne.s32.totalorder %s48, %s50
      %p54 = scmp.eq.s32.totalorder %s14, 0
      %p55 = por %p53, %p54
      %p56 = scmp.ne.s32.totalorder %s48, %s50
      %p57 = scmp.eq.s32.totalorder %s19, 1
      %p58 = por %p56, %p57
      %p59 = scmp.ne.s32.totalorder %s50, %s51
      %p60 = scmp.eq.s32.totalorder %s19, 0
      %p61 = por %p59, %p60
      %p62 = scmp.ne.s32.totalorder %s50, %s51
      %p63 = scmp.eq.s32.totalorder %s20, 1
      %p64 = por %p62, %p63
      %p66 = scmp.ne.s32.totalorder %s51, %s65
      %p67 = scmp.eq.s32.totalorder %s20, 0
      %p68 = por %p66, %p67
      %s70 = sadd.s32 %s69, 1
      %p73 = scmp.eq.s32.totalorder %s14, 1
      %p74 = scmp.ne.s32.totalorder %s69, %s71
      %p75 = scmp.eq.s32.totalorder %s14, 0
      %p76 = por %p74, %p75
      %p77 = scmp.ne.s32.totalorder %s69, %s71
      %p78 = scmp.eq.s32.totalorder %s19, 1
      %p79 = por %p77, %p78
      %p80 = scmp.ne.s32.totalorder %s71, %s72
      %p81 = scmp.eq.s32.totalorder %s19, 0
      %p82 = por %p80, %p81
      %p83 = scmp.ne.s32.totalorder %s71, %s72
      %p84 = scmp.eq.s32.totalorder %s20, 1
      %p85 = por %p83, %p84
      %p87 = scmp.ne.s32.totalorder %s72, %s86
      %p88 = scmp.eq.s32.totalorder %s20, 0
      %p89 = por %p87, %p88
      %s91 = sadd.s32 %s90, 1
      %p94 = scmp.eq.s32.totalorder %s14, 1
      %p95 = scmp.ne.s32.totalorder %s90, %s92
      %p96 = scmp.eq.s32.totalorder %s14, 0
      %p97 = por %p95, %p96
      %p98 = scmp.ne.s32.totalorder %s90, %s92
      %p99 = scmp.eq.s32.totalorder %s19, 1
      %p100 = por %p98, %p99
      %p101 = scmp.ne.s32.totalorder %s92, %s93
      %p102 = scmp.eq.s32.totalorder %s19, 0
      %p103 = por %p101, %p102
      %p104 = scmp.ne.s32.totalorder %s92, %s93
      %p105 = scmp.eq.s32.totalorder %s20, 1
      %p106 = por %p104, %p105
      %p108 = scmp.ne.s32.totalorder %s93, %s107
      %p109 = scmp.eq.s32.totalorder %s20, 0
      %p110 = por %p108, %p109
      %s112 = sadd.s32 %s111, 1
      %p115 = scmp.eq.s32.totalorder %s14, 1
      %p116 = scmp.ne.s32.totalorder %s111, %s113
      %p117 = scmp.eq.s32.totalorder %s14, 0
      %p118 = por %p116, %p117
      %p119 = scmp.ne.s32.totalorder %s111, %s113
      %p120 = scmp.eq.s32.totalorder %s19, 1
      %p121 = por %p119, %p120
      %p122 = scmp.ne.s32.totalorder %s113, %s114
      %p123 = scmp.eq.s32.totalorder %s19, 0
      %p124 = por %p122, %p123
      %p125 = scmp.ne.s32.totalorder %s113, %s114
      %p126 = scmp.eq.s32.totalorder %s20, 1
      %p127 = por %p125, %p126
      %p129 = scmp.ne.s32.totalorder %s114, %s128
      %p130 = scmp.eq.s32.totalorder %s20, 0
      %p131 = por %p129, %p130
      %s132 = ssub.s32 %s14, %s21
      %p133 = scmp.eq.s32.totalorder %s132, 0
      %s135 = sadd.s32 %s134, 1
      %s136 = scalar_select %p133, %s134, %s135
      %p139 = pneg %p133
      %p140 = scmp.eq.s32.totalorder %s14, 1
      %p141 = por %p139, %p140
      %p142 = scmp.ne.s32.totalorder %s134, %s137
      %p143 = scmp.eq.s32.totalorder %s14, 0
      %p144 = por %p142, %p143
      %p145 = scmp.ne.s32.totalorder %s134, %s137
      %p146 = scmp.eq.s32.totalorder %s19, 1
      %p147 = por %p145, %p146
      %p148 = scmp.ne.s32.totalorder %s137, %s138
      %p149 = scmp.eq.s32.totalorder %s19, 0
      %p150 = por %p148, %p149
      %p151 = scmp.ne.s32.totalorder %s137, %s138
      %p152 = scmp.eq.s32.totalorder %s20, 1
      %p153 = por %p151, %p152
      %p155 = scmp.ne.s32.totalorder %s138, %s154
      %p156 = scmp.eq.s32.totalorder %s20, 0
      %p157 = por %p155, %p156
      %p158 = scmp.le.s32.totalorder 1, %s14
      %p159 = scmp.lt.s32.totalorder %s14, 3
      %p160 = pnand %p158, %p159
      %p161 = pneg %p160
      // Predicated region
      $region9: #{tpu_custom_call.1} parent=5 // pred_check
        _
      $region10: #{tpu_custom_call.1} parent=5 // pred_check_branch
        %163 = sbr.rel (%p160) target = $region12
      $region11: #{tpu_custom_call.1} parent=5 // pred_region
        %s164 = ssub.s32 %s14, 1
        // Predicated region
        $region13: #{tpu_custom_call.1} parent=11 // pred_check
          %p165 = pneg %p61
        $region14: #{tpu_custom_call.1} parent=11 // pred_check_branch
          %167 = sbr.rel (%p165) target = $region16
        $region15: #{tpu_custom_call.1} parent=11 // pred_region
          _
        $region16: #{tpu_custom_call.1} parent=11 // pred_fallthru
          _
        // Predicated region
        $region17: #{tpu_custom_call.1} parent=11 // pred_check
          %p168 = pneg %p82
        $region18: #{tpu_custom_call.1} parent=11 // pred_check_branch
          %170 = sbr.rel (%p168) target = $region20
        $region19: #{tpu_custom_call.1} parent=11 // pred_region
          _
        $region20: #{tpu_custom_call.1} parent=11 // pred_fallthru
          _
        // Predicated region
        $region21: #{tpu_custom_call.1} parent=11 // pred_check
          %p171 = pneg %p103
        $region22: #{tpu_custom_call.1} parent=11 // pred_check_branch
          %173 = sbr.rel (%p171) target = $region24
        $region23: #{tpu_custom_call.1} parent=11 // pred_region
          _
        $region24: #{tpu_custom_call.1} parent=11 // pred_fallthru
          _
        // Predicated region
        $region25: #{tpu_custom_call.1} parent=11 // pred_check
          %p174 = pneg %p124
        $region26: #{tpu_custom_call.1} parent=11 // pred_check_branch
          %176 = sbr.rel (%p174) target = $region28
        $region27: #{tpu_custom_call.1} parent=11 // pred_region
          _
        $region28: #{tpu_custom_call.1} parent=11 // pred_fallthru
          _
      $region12: #{tpu_custom_call.1} parent=5 // pred_fallthru
        _
      %p177 = scmp.lt.s32.totalorder %s14, 2
      // Predicated region
      $region29: #{tpu_custom_call.1} parent=5 // pred_check
        %p178 = pneg %p177
      $region30: #{tpu_custom_call.1} parent=5 // pred_check_branch
        %180 = sbr.rel (%p178) target = $region32
      $region31: #{tpu_custom_call.1} parent=5 // pred_region
        // Predicated region
        $region33: #{tpu_custom_call.1} parent=31 // pred_check
          %p181 = pneg %p34
        $region34: #{tpu_custom_call.1} parent=31 // pred_check_branch
          %183 = sbr.rel (%p181) target = $region36
        $region35: #{tpu_custom_call.1} parent=31 // pred_region
          %s184 = smul.u32 24, %s14
          %p185 = scmp.lt.s32.totalorder %s184, 47
          %s186 = scalar_select %p185, %s184, 47
          %s187 = smul.addr %s186, 4
          %s188 = scalar_lea.vmem %s0, %s187
          %s189 = smul.u32 24, %s14
        $region36: #{tpu_custom_call.1} parent=31 // pred_fallthru
          _
      $region32: #{tpu_custom_call.1} parent=5 // pred_fallthru
        _
      %p190 = scmp.le.s32.totalorder 1, %s14
      %p191 = scmp.lt.s32.totalorder %s14, 3
      %p192 = pnand %p190, %p191
      %p193 = pneg %p192
      // Predicated region
      $region37: #{tpu_custom_call.1} parent=5 // pred_check
        _
      $region38: #{tpu_custom_call.1} parent=5 // pred_check_branch
        %195 = sbr.rel (%p192) target = $region40
      $region39: #{tpu_custom_call.1} parent=5 // pred_region
        %s196 = ssub.s32 %s14, 1
        %s197 = smul.u32 24, %s19
        %p198 = scmp.lt.s32.totalorder %s197, 47
        %s199 = scalar_select %p198, %s197, 47
        %s200 = smul.addr %s199, 4
        %s201 = scalar_lea.vmem %s0, %s200
        %p202 = pneg %p40
        %p203 = pneg %p37
        %p204 = pneg %p61
        %p205 = pneg %p58
        %p206 = pneg %p82
        %p207 = pneg %p79
        %p208 = pneg %p103
        %p209 = pneg %p100
        %p210 = pneg %p124
        %p211 = pneg %p121
        %p212 = pneg %p150
        %p213 = pneg %p147
        %s214 = sand.u32 %s137, 1
        %s215 = scalar_lea.sflag [#allocation3], %s214
        %s216 = sand.u32 %s137, 1
        %s217 = smul.addr %s216, 8
        %s218 = scalar_lea.vmem [#allocation2], %s217
        %s219 = smul.u32 24, %s19
        %p220 = scmp.lt.s32.totalorder %s219, 47
        %s221 = scalar_select %p220, %s219, 47
        %s222 = smul.addr %s221, 4
        %s223 = scalar_lea.vmem %s0, %s222
        %s224 = smul.u32 24, %s19
        %v226 = vld [vmem:[%s223] sm:$0xf]
        %v227 = vld [vmem:[%s223 + $0x4] sm:$0xf]
        %v228 = vld [vmem:[%s223 + $0x8] sm:$0xf]
        %v229 = vld [vmem:[%s223 + $0xc] sm:$0xf]
        %v230 = vld [vmem:[%s223 + $0x10] sm:$0xf]
        %v231 = vld [vmem:[%s223 + $0x14] sm:$0xf]
        %v232 = vld [vmem:[%s223 + $0x18] sm:$0xf]
        %v233 = vld [vmem:[%s223 + $0x1c] sm:$0xf]
        %v234 = vld [vmem:[%s223 + $0x20] sm:$0xf]
        %v235 = vld [vmem:[%s223 + $0x24] sm:$0xf]
        %v236 = vld [vmem:[%s223 + $0x28] sm:$0xf]
        %v237 = vld [vmem:[%s223 + $0x2c] sm:$0xf]
        %v238 = vld [vmem:[%s223 + $0x30] sm:$0xf]
        %v239 = vld [vmem:[%s223 + $0x34] sm:$0xf]
        %v240 = vld [vmem:[%s223 + $0x38] sm:$0xf]
        %v241 = vld [vmem:[%s223 + $0x3c] sm:$0xf]
        %v242 = vld [vmem:[%s223 + $0x40] sm:$0xf]
        %v243 = vld [vmem:[%s223 + $0x44] sm:$0xf]
        %v244 = vld [vmem:[%s223 + $0x48] sm:$0xf]
        %v245 = vld [vmem:[%s223 + $0x4c] sm:$0xf]
        %v246 = vld [vmem:[%s223 + $0x50] sm:$0xf]
        %v247 = vld [vmem:[%s223 + $0x54] sm:$0xf]
        %v248 = vld [vmem:[%s223 + $0x58] sm:$0xf]
        %v249 = vld [vmem:[%s223 + $0x5c] sm:$0xf]
        %v250 = vld [vmem:[%s1] sm:$0xff]
        %v251 = vld [vmem:[%s1 + $0x8] sm:$0xff]
        %v252 = vld [vmem:[%s1 + $0x10] sm:$0xff]
        %v253 = vld [vmem:[%s1 + $0x18] sm:$0xff]
        %v254 = vld [vmem:[%s1 + $0x20] sm:$0xff]
        %v255 = vld [vmem:[%s1 + $0x28] sm:$0xff]
        %v256 = vld [vmem:[%s1 + $0x30] sm:$0x11]
        %v281 = vunpack.c.l.b16 %v226
        %v282 = vunpack.c.l.b16 %v227
        %v283 = vunpack.c.l.b16 %v228
        %v284 = vunpack.c.l.b16 %v229
        %v285 = vunpack.c.l.b16 %v230
        %v286 = vunpack.c.l.b16 %v231
        %v287 = vunpack.c.l.b16 %v232
        %v288 = vunpack.c.l.b16 %v233
        %v289 = vunpack.c.l.b16 %v234
        %v290 = vunpack.c.l.b16 %v235
        %v291 = vunpack.c.l.b16 %v236
        %v292 = vunpack.c.l.b16 %v237
        %v293 = vunpack.c.l.b16 %v238
        %v294 = vunpack.c.l.b16 %v239
        %v295 = vunpack.c.l.b16 %v240
        %v296 = vunpack.c.l.b16 %v241
        %v297 = vunpack.c.l.b16 %v242
        %v298 = vunpack.c.l.b16 %v243
        %v299 = vunpack.c.l.b16 %v244
        %v300 = vunpack.c.l.b16 %v245
        %v301 = vunpack.c.l.b16 %v246
        %v302 = vunpack.c.l.b16 %v247
        %v303 = vunpack.c.l.b16 %v248
        %v304 = vunpack.c.l.b16 %v249
        %v305 = vpack.c.b16 %v282, %v281
        %v306 = vpack.c.b16 %v284, %v283
        %v307 = vpack.c.b16 %v286, %v285
        %v308 = vpack.c.b16 %v288, %v287
        %v309 = vpack.c.b16 %v290, %v289
        %v310 = vpack.c.b16 %v292, %v291
        %v311 = vpack.c.b16 %v294, %v293
        %v312 = vpack.c.b16 %v296, %v295
        %v313 = vpack.c.b16 %v298, %v297
        %v314 = vpack.c.b16 %v300, %v299
        %v315 = vpack.c.b16 %v302, %v301
        %v316 = vpack.c.b16 %v304, %v303
        %v324 = vunpack.c.l.b16 %v250
        %v325 = vunpack.c.h.b16 %v250
        %v326 = vunpack.c.l.b16 %v251
        %v327 = vunpack.c.h.b16 %v251
        %v328 = vunpack.c.l.b16 %v252
        %v329 = vunpack.c.h.b16 %v252
        %v330 = vunpack.c.l.b16 %v253
        %v331 = vunpack.c.h.b16 %v253
        %v332 = vunpack.c.l.b16 %v254
        %v333 = vunpack.c.h.b16 %v254
        %v334 = vunpack.c.l.b16 %v255
        %v335 = vunpack.c.h.b16 %v255
        %v336 = vunpack.c.l.b16 %v256
        %v337 = vunpack.c.h.b16 %v256
        %v338 = vpack.c.b16 %v326, %v324
        %v339 = vpack.c.b16 %v327, %v325
        %v340 = vpack.c.b16 %v330, %v328
        %v341 = vpack.c.b16 %v331, %v329
        %v342 = vpack.c.b16 %v334, %v332
        %v343 = vpack.c.b16 %v335, %v333
        %v344 = vpack.c.b16 %v336, %v336
        %v345 = vpack.c.b16 %v337, %v337
        %vm352 = vcmask 408576
        %v354 = vsel %vm352, %v305, 0
        %v357 = vsel %vm352, %v306, 0
        %v360 = vsel %vm352, %v307, 0
        %v363 = vsel %vm352, %v308, 0
        %v366 = vsel %vm352, %v309, 0
        %v369 = vsel %vm352, %v310, 0
        %v372 = vsel %vm352, %v311, 0
        %v375 = vsel %vm352, %v312, 0
        %v378 = vsel %vm352, %v313, 0
        %v381 = vsel %vm352, %v314, 0
        %v384 = vsel %vm352, %v315, 0
        %v387 = vsel %vm352, %v316, 0
        %vm389 = vcmask 1040384
        %v391 = vsel %vm389, %v344, 0
        %v394 = vsel %vm389, %v345, 0
        %396 = vmatprep.subr.bf16.mxu0 %v339
        %397 = vmatpush1.bf16.msra.mxu0 %v338
        %398 = vmatprep.subr.bf16.mxu0 %v341
        %399 = vmatpush1.bf16.msra.mxu0 %v340
        %400 = vmatprep.subr.bf16.mxu0 %v343
        %401 = vmatpush1.bf16.msra.mxu0 %v342
        %402 = vmatprep.subr.bf16.mxu0 %v394
        %403 = vmatpush1.bf16.msra.mxu0 %v391
        %404 = vmatprep.subr.bf16.mxu0 0
        %405 = vmatpush1.bf16.msra.mxu0 0
        %406 = vmatprep.subr.bf16.mxu0 0
        %407 = vmatpush1.bf16.msra.mxu0 0
        %408 = vmatprep.subr.bf16.mxu0 0
        %409 = vmatpush1.bf16.msra.mxu0 0
        %410 = vmatprep.subr.bf16.mxu0 0
        %411 = vmatpush1.bf16.msra.mxu0 0
        %412 = vmatprep.subr.bf16.mxu0 0
        %413 = vmatpush1.bf16.msra.mxu0 0
        %414 = vmatprep.subr.bf16.mxu0 0
        %415 = vmatpush1.bf16.msra.mxu0 0
        %416 = vmatprep.subr.bf16.mxu0 0
        %417 = vmatpush1.bf16.msra.mxu0 0
        %418 = vmatprep.subr.bf16.mxu0 0
        %419 = vmatpush1.bf16.msra.mxu0 0
        %420 = vmatprep.subr.bf16.mxu0 0
        %421 = vmatpush1.bf16.msra.mxu0 0
        %422 = vmatprep.subr.bf16.mxu0 0
        %423 = vmatpush1.bf16.msra.mxu0 0
        %424 = vmatprep.subr.bf16.mxu0 0
        %425 = vmatpush1.bf16.msra.mxu0 0
        %426 = vmatprep.subr.bf16.mxu0 0
        %427 = vmatpush1.bf16.msra.mxu0 0
        %428 = vmatprep.mubr.bf16.mxu0 0
        %429 = vmatmul.mubr.bf16.gmra.mrb[0].mxu0 %v354
        %v430 = vpop.f32.mrb[0].mxu0
        %v431 = vadd.f32 0.0, %v430
        %v432 = vpop.f32.mrb[0].mxu0
        %v433 = vpop.f32.mrb[0].mxu0
        %v434 = vadd.f32 0.0, %v433
        %v435 = vpop.f32.mrb[0].mxu0
        %436 = vmatprep.mubr.bf16.mxu0 0
        %437 = vmatmul.mubr.bf16.gmra.mrb[0].mxu0 %v357
        %v438 = vpop.f32.mrb[0].mxu0
        %v439 = vadd.f32 0.0, %v438
        %v440 = vpop.f32.mrb[0].mxu0
        %v441 = vpop.f32.mrb[0].mxu0
        %v442 = vadd.f32 0.0, %v441
        %v443 = vpop.f32.mrb[0].mxu0
        %444 = vmatprep.mubr.bf16.mxu0 0
        %445 = vmatmul.mubr.bf16.gmra.mrb[0].mxu0 %v360
        %v446 = vpop.f32.mrb[0].mxu0
        %v447 = vadd.f32 0.0, %v446
        %v448 = vpop.f32.mrb[0].mxu0
        %v449 = vadd.f32 0.0, %v448
        %v450 = vpop.f32.mrb[0].mxu0
        %v451 = vadd.f32 0.0, %v450
        %v452 = vpop.f32.mrb[0].mxu0
        %v453 = vadd.f32 0.0, %v452
        %454 = vmatprep.mubr.bf16.mxu0 0
        %455 = vmatmul.mubr.bf16.gmra.mrb[0].mxu0 %v363
        %v456 = vpop.f32.mrb[0].mxu0
        %v457 = vadd.f32 0.0, %v456
        %v458 = vpop.f32.mrb[0].mxu0
        %v459 = vadd.f32 0.0, %v458
        %v460 = vpop.f32.mrb[0].mxu0
        %v461 = vadd.f32 0.0, %v460
        %v462 = vpop.f32.mrb[0].mxu0
        %v463 = vadd.f32 0.0, %v462
        %464 = vmatprep.mubr.bf16.mxu0 0
        %465 = vmatmul.mubr.bf16.gmra.mrb[0].mxu0 %v366
        %v466 = vpop.f32.mrb[0].mxu0
        %v467 = vadd.f32 0.0, %v466
        %v468 = vpop.f32.mrb[0].mxu0
        %v469 = vadd.f32 0.0, %v468
        %v470 = vpop.f32.mrb[0].mxu0
        %v471 = vadd.f32 0.0, %v470
        %v472 = vpop.f32.mrb[0].mxu0
        %v473 = vadd.f32 0.0, %v472
        %474 = vmatprep.mubr.bf16.mxu0 0
        %475 = vmatmul.mubr.bf16.gmra.mrb[0].mxu0 %v369
        %v476 = vpop.f32.mrb[0].mxu0
        %v477 = vadd.f32 0.0, %v476
        %v478 = vpop.f32.mrb[0].mxu0
        %v479 = vadd.f32 0.0, %v478
        %v480 = vpop.f32.mrb[0].mxu0
        %v481 = vadd.f32 0.0, %v480
        %v482 = vpop.f32.mrb[0].mxu0
        %v483 = vadd.f32 0.0, %v482
        %484 = vmatprep.mubr.bf16.mxu0 0
        %485 = vmatmul.mubr.bf16.gmra.mrb[0].mxu0 %v372
        %v486 = vpop.f32.mrb[0].mxu0
        %v487 = vadd.f32 0.0, %v486
        %v488 = vpop.f32.mrb[0].mxu0
        %v489 = vadd.f32 0.0, %v488
        %v490 = vpop.f32.mrb[0].mxu0
        %v491 = vadd.f32 0.0, %v490
        %v492 = vpop.f32.mrb[0].mxu0
        %v493 = vadd.f32 0.0, %v492
        %494 = vmatprep.mubr.bf16.mxu0 0
        %495 = vmatmul.mubr.bf16.gmra.mrb[0].mxu0 %v375
        %v496 = vpop.f32.mrb[0].mxu0
        %v497 = vadd.f32 0.0, %v496
        %v498 = vpop.f32.mrb[0].mxu0
        %v499 = vadd.f32 0.0, %v498
        %v500 = vpop.f32.mrb[0].mxu0
        %v501 = vadd.f32 0.0, %v500
        %v502 = vpop.f32.mrb[0].mxu0
        %v503 = vadd.f32 0.0, %v502
        %504 = vmatprep.mubr.bf16.mxu0 0
        %505 = vmatmul.mubr.bf16.gmra.mrb[0].mxu0 %v378
        %v506 = vpop.f32.mrb[0].mxu0
        %v507 = vadd.f32 0.0, %v506
        %v508 = vpop.f32.mrb[0].mxu0
        %v509 = vadd.f32 0.0, %v508
        %v510 = vpop.f32.mrb[0].mxu0
        %v511 = vadd.f32 0.0, %v510
        %v512 = vpop.f32.mrb[0].mxu0
        %v513 = vadd.f32 0.0, %v512
        %514 = vmatprep.mubr.bf16.mxu0 0
        %515 = vmatmul.mubr.bf16.gmra.mrb[0].mxu0 %v381
        %v516 = vpop.f32.mrb[0].mxu0
        %v517 = vadd.f32 0.0, %v516
        %v518 = vpop.f32.mrb[0].mxu0
        %v519 = vadd.f32 0.0, %v518
        %v520 = vpop.f32.mrb[0].mxu0
        %v521 = vadd.f32 0.0, %v520
        %v522 = vpop.f32.mrb[0].mxu0
        %v523 = vadd.f32 0.0, %v522
        %524 = vmatprep.mubr.bf16.mxu0 0
        %525 = vmatmul.mubr.bf16.gmra.mrb[0].mxu0 %v384
        %v526 = vpop.f32.mrb[0].mxu0
        %v527 = vpop.f32.mrb[0].mxu0
        %v528 = vadd.f32 0.0, %v527
        %v529 = vpop.f32.mrb[0].mxu0
        %v530 = vpop.f32.mrb[0].mxu0
        %531 = vmatprep.mubr.bf16.mxu0 0
        %532 = vmatmul.mubr.bf16.gmra.mrb[0].mxu0 %v387
        %v533 = vpop.f32.mrb[0].mxu0
        %v534 = vpop.f32.mrb[0].mxu0
        %v535 = vpop.f32.mrb[0].mxu0
        %v536 = vpop.f32.mrb[0].mxu0
        %537 = vdwg.mxu0
        %555 = vrot.lane.b32.xlu0 %v434, 96
        %v556 = vpop.permute.xlu0 %555
        %557 = vrot.lane.b32.xlu0 %v439, 96
        %v558 = vpop.permute.xlu0 %557
        %559 = vrot.lane.b32.xlu0 %v442, 96
        %v560 = vpop.permute.xlu0 %559
        %561 = vrot.lane.b32.xlu0 %v447, 96
        %v562 = vpop.permute.xlu0 %561
        %563 = vrot.lane.b32.xlu0 %v451, 96
        %v564 = vpop.permute.xlu0 %563
        %565 = vrot.lane.b32.xlu0 %v457, 96
        %v566 = vpop.permute.xlu0 %565
        %567 = vrot.lane.b32.xlu0 %v461, 96
        %v568 = vpop.permute.xlu0 %567
        %569 = vrot.lane.b32.xlu0 %v467, 96
        %v570 = vpop.permute.xlu0 %569
        %571 = vrot.lane.b32.xlu0 %v471, 96
        %v572 = vpop.permute.xlu0 %571
        %573 = vrot.lane.b32.xlu0 %v477, 96
        %v574 = vpop.permute.xlu0 %573
        %575 = vrot.lane.b32.xlu0 %v481, 96
        %v576 = vpop.permute.xlu0 %575
        %577 = vrot.lane.b32.xlu0 %v487, 96
        %v578 = vpop.permute.xlu0 %577
        %579 = vrot.lane.b32.xlu0 %v491, 96
        %v580 = vpop.permute.xlu0 %579
        %581 = vrot.lane.b32.xlu0 %v497, 96
        %v582 = vpop.permute.xlu0 %581
        %583 = vrot.lane.b32.xlu0 %v501, 96
        %v584 = vpop.permute.xlu0 %583
        %585 = vrot.lane.b32.xlu0 %v507, 96
        %v586 = vpop.permute.xlu0 %585
        %587 = vrot.lane.b32.xlu0 %v511, 96
        %v588 = vpop.permute.xlu0 %587
        %v606 = vadd.f32 %v431, %v556
        %v607 = vadd.f32 %v434, %v558
        %v608 = vadd.f32 %v439, %v560
        %v609 = vadd.f32 %v442, %v562
        %v610 = vadd.f32 %v447, %v564
        %v611 = vadd.f32 %v451, %v566
        %v612 = vadd.f32 %v457, %v568
        %v613 = vadd.f32 %v461, %v570
        %v614 = vadd.f32 %v467, %v572
        %v615 = vadd.f32 %v471, %v574
        %v616 = vadd.f32 %v477, %v576
        %v617 = vadd.f32 %v481, %v578
        %v618 = vadd.f32 %v487, %v580
        %v619 = vadd.f32 %v491, %v582
        %v620 = vadd.f32 %v497, %v584
        %v621 = vadd.f32 %v501, %v586
        %v622 = vadd.f32 %v507, %v588
        %624 = vrot.lane.b32.xlu0 %v439, 64
        %v625 = vpop.permute.xlu0 %624
        %626 = vrot.lane.b32.xlu0 %v442, 64
        %v627 = vpop.permute.xlu0 %626
        %628 = vrot.lane.b32.xlu0 %v447, 64
        %v629 = vpop.permute.xlu0 %628
        %630 = vrot.lane.b32.xlu0 %v451, 64
        %v631 = vpop.permute.xlu0 %630
        %632 = vrot.lane.b32.xlu0 %v457, 64
        %v633 = vpop.permute.xlu0 %632
        %634 = vrot.lane.b32.xlu0 %v461, 64
        %v635 = vpop.permute.xlu0 %634
        %636 = vrot.lane.b32.xlu0 %v467, 64
        %v637 = vpop.permute.xlu0 %636
        %638 = vrot.lane.b32.xlu0 %v471, 64
        %v639 = vpop.permute.xlu0 %638
        %640 = vrot.lane.b32.xlu0 %v477, 64
        %v641 = vpop.permute.xlu0 %640
        %642 = vrot.lane.b32.xlu0 %v481, 64
        %v643 = vpop.permute.xlu0 %642
        %644 = vrot.lane.b32.xlu0 %v487, 64
        %v645 = vpop.permute.xlu0 %644
        %646 = vrot.lane.b32.xlu0 %v491, 64
        %v647 = vpop.permute.xlu0 %646
        %648 = vrot.lane.b32.xlu0 %v497, 64
        %v649 = vpop.permute.xlu0 %648
        %650 = vrot.lane.b32.xlu0 %v501, 64
        %v651 = vpop.permute.xlu0 %650
        %652 = vrot.lane.b32.xlu0 %v507, 64
        %v653 = vpop.permute.xlu0 %652
        %654 = vrot.lane.b32.xlu0 %v511, 64
        %v655 = vpop.permute.xlu0 %654
        %656 = vrot.lane.b32.xlu0 %v517, 64
        %v657 = vpop.permute.xlu0 %656
        %v675 = vadd.f32 %v606, %v625
        %v676 = vadd.f32 %v607, %v627
        %v677 = vadd.f32 %v608, %v629
        %v678 = vadd.f32 %v609, %v631
        %v679 = vadd.f32 %v610, %v633
        %v680 = vadd.f32 %v611, %v635
        %v681 = vadd.f32 %v612, %v637
        %v682 = vadd.f32 %v613, %v639
        %v683 = vadd.f32 %v614, %v641
        %v684 = vadd.f32 %v615, %v643
        %v685 = vadd.f32 %v616, %v645
        %v686 = vadd.f32 %v617, %v647
        %v687 = vadd.f32 %v618, %v649
        %v688 = vadd.f32 %v619, %v651
        %v689 = vadd.f32 %v620, %v653
        %v690 = vadd.f32 %v621, %v655
        %v691 = vadd.f32 %v622, %v657
        %693 = vrot.lane.b32.xlu0 %v442, 32
        %v694 = vpop.permute.xlu0 %693
        %695 = vrot.lane.b32.xlu0 %v447, 32
        %v696 = vpop.permute.xlu0 %695
        %697 = vrot.lane.b32.xlu0 %v451, 32
        %v698 = vpop.permute.xlu0 %697
        %699 = vrot.lane.b32.xlu0 %v457, 32
        %v700 = vpop.permute.xlu0 %699
        %701 = vrot.lane.b32.xlu0 %v461, 32
        %v702 = vpop.permute.xlu0 %701
        %703 = vrot.lane.b32.xlu0 %v467, 32
        %v704 = vpop.permute.xlu0 %703
        %705 = vrot.lane.b32.xlu0 %v471, 32
        %v706 = vpop.permute.xlu0 %705
        %707 = vrot.lane.b32.xlu0 %v477, 32
        %v708 = vpop.permute.xlu0 %707
        %709 = vrot.lane.b32.xlu0 %v481, 32
        %v710 = vpop.permute.xlu0 %709
        %711 = vrot.lane.b32.xlu0 %v487, 32
        %v712 = vpop.permute.xlu0 %711
        %713 = vrot.lane.b32.xlu0 %v491, 32
        %v714 = vpop.permute.xlu0 %713
        %715 = vrot.lane.b32.xlu0 %v497, 32
        %v716 = vpop.permute.xlu0 %715
        %717 = vrot.lane.b32.xlu0 %v501, 32
        %v718 = vpop.permute.xlu0 %717
        %719 = vrot.lane.b32.xlu0 %v507, 32
        %v720 = vpop.permute.xlu0 %719
        %721 = vrot.lane.b32.xlu0 %v511, 32
        %v722 = vpop.permute.xlu0 %721
        %723 = vrot.lane.b32.xlu0 %v517, 32
        %v724 = vpop.permute.xlu0 %723
        %725 = vrot.lane.b32.xlu0 %v521, 32
        %v726 = vpop.permute.xlu0 %725
        %v744 = vadd.f32 %v675, %v694
        %v745 = vadd.f32 %v676, %v696
        %v746 = vadd.f32 %v677, %v698
        %v747 = vadd.f32 %v678, %v700
        %v748 = vadd.f32 %v679, %v702
        %v749 = vadd.f32 %v680, %v704
        %v750 = vadd.f32 %v681, %v706
        %v751 = vadd.f32 %v682, %v708
        %v752 = vadd.f32 %v683, %v710
        %v753 = vadd.f32 %v684, %v712
        %v754 = vadd.f32 %v685, %v714
        %v755 = vadd.f32 %v686, %v716
        %v756 = vadd.f32 %v687, %v718
        %v757 = vadd.f32 %v688, %v720
        %v758 = vadd.f32 %v689, %v722
        %v759 = vadd.f32 %v690, %v724
        %v760 = vadd.f32 %v691, %v726
        %v761 = vadd.f32 %v744, %v449
        %v762 = vadd.f32 %v745, %v453
        %v763 = vadd.f32 %v746, %v459
        %v764 = vadd.f32 %v747, %v463
        %v765 = vadd.f32 %v748, %v469
        %v766 = vadd.f32 %v749, %v473
        %v767 = vadd.f32 %v750, %v479
        %v768 = vadd.f32 %v751, %v483
        %v769 = vadd.f32 %v752, %v489
        %v770 = vadd.f32 %v753, %v493
        %v771 = vadd.f32 %v754, %v499
        %v772 = vadd.f32 %v755, %v503
        %v773 = vadd.f32 %v756, %v509
        %v774 = vadd.f32 %v757, %v513
        %v775 = vadd.f32 %v758, %v519
        %v776 = vadd.f32 %v759, %v523
        %v777 = vadd.f32 %v760, %v528
        %v778 = vld [vmem:[%s2] sm:$0x1]
        %v780 = vlaneseq
        %v781 = vshrl.u32 %v780, 7
        %v782 = vsub.s32 0, %v781
        %v783 = vrot.slane %v778, %v782
        %v785 = vadd.f32 %v761, %v783
        %v786 = vadd.f32 %v762, %v783
        %v787 = vadd.f32 %v763, %v783
        %v788 = vadd.f32 %v764, %v783
        %v789 = vadd.f32 %v765, %v783
        %v790 = vadd.f32 %v766, %v783
        %v791 = vadd.f32 %v767, %v783
        %v792 = vadd.f32 %v768, %v783
        %v793 = vadd.f32 %v769, %v783
        %v794 = vadd.f32 %v770, %v783
        %v795 = vadd.f32 %v771, %v783
        %v796 = vadd.f32 %v772, %v783
        %v797 = vadd.f32 %v773, %v783
        %v798 = vadd.f32 %v774, %v783
        %v799 = vadd.f32 %v775, %v783
        %v800 = vadd.f32 %v776, %v783
        %v801 = vadd.f32 %v777, %v783
        %v802 = vmax.f32 %v785, %v786
        %v803 = vmax.f32 %v802, %v787
        %v804 = vmax.f32 %v803, %v788
        %v805 = vmax.f32 %v804, %v789
        %v806 = vmax.f32 %v805, %v790
        %v807 = vmax.f32 %v806, %v791
        %v808 = vmax.f32 %v807, %v792
        %v809 = vmax.f32 %v808, %v793
        %v810 = vmax.f32 %v809, %v794
        %v811 = vmax.f32 %v810, %v795
        %v812 = vmax.f32 %v811, %v796
        %v813 = vmax.f32 %v812, %v797
        %v814 = vmax.f32 %v813, %v798
        %v815 = vmax.f32 %v814, %v799
        %v816 = vmax.f32 %v815, %v800
        %v817 = vmax.f32 %v816, %v801
        %v818 = vmax.f32 %v817, 0.0
        %v819 = vld [vmem:[%s3] sm:$0xff]
        %v820 = vld [vmem:[%s3 + $0x8] sm:$0xff]
        %v821 = vld [vmem:[%s3 + $0x10] sm:$0xff]
        %v822 = vld [vmem:[%s3 + $0x18] sm:$0xff]
        %v823 = vld [vmem:[%s4] sm:$0x1]
        %v825 = vlaneseq
        %v826 = vshrl.u32 %v825, 7
        %v827 = vsub.s32 0, %v826
        %v828 = vrot.slane %v823, %v827
        %vm830 = vcmask 261120
        %v832 = vsel %vm830, %v818, 0
        %834 = vmatprep.subr.mxu0 0.0
        %835 = vmatpush1.msra.mxu0 %v819
        %836 = vmatprep.subr.mxu0 0.0
        %837 = vmatpush1.msra.mxu0 %v820
        %838 = vmatprep.subr.mxu0 0.0
        %839 = vmatpush1.msra.mxu0 %v821
        %840 = vmatprep.subr.mxu0 0.0
        %841 = vmatpush1.msra.mxu0 %v822
        %842 = vmatprep.subr.mxu0 0.0
        %843 = vmatpush1.msra.mxu0 0.0
        %844 = vmatprep.subr.mxu0 0.0
        %845 = vmatpush1.msra.mxu0 0.0
        %846 = vmatprep.subr.mxu0 0.0
        %847 = vmatpush1.msra.mxu0 0.0
        %848 = vmatprep.subr.mxu0 0.0
        %849 = vmatpush1.msra.mxu0 0.0
        %850 = vmatprep.subr.mxu0 0.0
        %851 = vmatpush1.msra.mxu0 0.0
        %852 = vmatprep.subr.mxu0 0.0
        %853 = vmatpush1.msra.mxu0 0.0
        %854 = vmatprep.subr.mxu0 0.0
        %855 = vmatpush1.msra.mxu0 0.0
        %856 = vmatprep.subr.mxu0 0.0
        %857 = vmatpush1.msra.mxu0 0.0
        %858 = vmatprep.subr.mxu0 0.0
        %859 = vmatpush1.msra.mxu0 0.0
        %860 = vmatprep.subr.mxu0 0.0
        %861 = vmatpush1.msra.mxu0 0.0
        %862 = vmatprep.subr.mxu0 0.0
        %863 = vmatpush1.msra.mxu0 0.0
        %864 = vmatprep.subr.mxu0 0.0
        %865 = vmatpush1.msra.mxu0 0.0
        %866 = vmatprep.subr.mxu0 0.0
        %867 = vmatpush1.msra.mxu0 0.0
        %868 = vmatprep.subr.mxu0 0.0
        %869 = vmatpush1.msra.mxu0 0.0
        %870 = vmatprep.subr.mxu0 0.0
        %871 = vmatpush1.msra.mxu0 0.0
        %872 = vmatprep.subr.mxu0 0.0
        %873 = vmatpush1.msra.mxu0 0.0
        %874 = vmatprep.subr.mxu0 0.0
        %875 = vmatpush1.msra.mxu0 0.0
        %876 = vmatprep.subr.mxu0 0.0
        %877 = vmatpush1.msra.mxu0 0.0
        %878 = vmatprep.subr.mxu0 0.0
        %879 = vmatpush1.msra.mxu0 0.0
        %880 = vmatprep.subr.mxu0 0.0
        %881 = vmatpush1.msra.mxu0 0.0
        %882 = vmatprep.subr.mxu0 0.0
        %883 = vmatpush1.msra.mxu0 0.0
        %884 = vmatprep.subr.mxu0 0.0
        %885 = vmatpush1.msra.mxu0 0.0
        %886 = vmatprep.subr.mxu0 0.0
        %887 = vmatpush1.msra.mxu0 0.0
        %888 = vmatprep.subr.mxu0 0.0
        %889 = vmatpush1.msra.mxu0 0.0
        %890 = vmatprep.subr.mxu0 0.0
        %891 = vmatpush1.msra.mxu0 0.0
        %892 = vmatprep.subr.mxu0 0.0
        %893 = vmatpush1.msra.mxu0 0.0
        %894 = vmatprep.subr.mxu0 0.0
        %895 = vmatpush1.msra.mxu0 0.0
        %896 = vmatprep.subr.mxu0 0.0
        %897 = vmatpush1.msra.mxu0 0.0
        %898 = vmatprep.mubr.f32.mxu0 0.0
        %899 = vmatmul.mubr.f32.gmra.mrb[0].mxu0 %v832
        %v900 = vpop.f32.mrb[0].mxu0
        %v901 = vadd.f32 %v828, %v900
        %v902 = vpop.f32.mrb[0].mxu0
        %903 = vdwg.mxu0
        %v904 = vmax.f32 %v901, 0.0
        %v905 = vxor.u32 %v901, 2147483648
        %v906 = vmul.f32 %v905, 1.442695
        %v907 = vpow.pop %v906
        %v908 = vadd.f32 %v907, 1.0
        %v909 = vrcp.pop %v908
        %v910 = vmul.f32 1.0, %v909
        %912 = vrot.lane.b32.xlu0 %v904, 32
        %v913 = vpop.permute.xlu0 %912
        %v915 = vmul.f32 %v910, %v913
        %v916 = vsub.f32 1.0, %v910
        %917 = vrot.lane.b32.xlu0 %v818, 32
        %v918 = vpop.permute.xlu0 %917
        %v920 = vmul.f32 %v916, %v918
        %v921 = vadd.f32 %v915, %v920
        %923 = vrot.lane.b32.xlu0 %v921, 96
        %v924 = vpop.permute.xlu0 %923
        %926 = vst.msk [vmem:[%s218] sm:$0xff] %vm830, %v924
        %s927 = sand.u32 %s137, 1
        %s928 = scalar_lea.sflag [#allocation3], %s927
        %s929 = sand.u32 %s137, 1
        %s930 = smul.addr %s929, 8
        %s931 = scalar_lea.vmem [#allocation2], %s930
        // Predicated region
        $region41: #{tpu_custom_call.1} parent=39 // pred_check
          %p932 = pneg %p147
        $region42: #{tpu_custom_call.1} parent=39 // pred_check_branch
          %934 = sbr.rel (%p932) target = $region44
        $region43: #{tpu_custom_call.1} parent=39 // pred_region
          %s936 = ssub.s32 128, 128
          %937 = vsyncadd %s928, %s936
          %s938 = smul.addr %s19, 128
          %s939 = scalar_lea.hbm %s5, %s938
          %s941 = sshll.u32 %s931, 4
          %s942 = int_to_ptr.vmem [resolvable:$true] %s941
          %944 = dma.vmem_to_hbm [thread:$0]  %s942, 128, %s939, %s928
        $region44: #{tpu_custom_call.1} parent=39 // pred_fallthru
          _
      $region40: #{tpu_custom_call.1} parent=5 // pred_fallthru
        _
      %p945 = scmp.le.s32.totalorder 2, %s14
      // Predicated region
      $region45: #{tpu_custom_call.1} parent=5 // pred_check
        %p946 = pneg %p945
      $region46: #{tpu_custom_call.1} parent=5 // pred_check_branch
        %948 = sbr.rel (%p946) target = $region48
      $region47: #{tpu_custom_call.1} parent=5 // pred_region
        %s949 = ssub.s32 %s14, 2
        // Predicated region
        $region49: #{tpu_custom_call.1} parent=47 // pred_check
          %p950 = pneg %p153
        $region50: #{tpu_custom_call.1} parent=47 // pred_check_branch
          %952 = sbr.rel (%p950) target = $region52
        $region51: #{tpu_custom_call.1} parent=47 // pred_region
          %s953 = sand.u32 %s138, 1
          %s954 = scalar_lea.sflag [#allocation3], %s953
          %s955 = sand.u32 %s138, 1
          %s956 = smul.addr %s955, 8
          %s957 = scalar_lea.vmem [#allocation2], %s956
          %958 = dma.done %s954, 128
        $region52: #{tpu_custom_call.1} parent=47 // pred_fallthru
          _
      $region48: #{tpu_custom_call.1} parent=5 // pred_fallthru
        _
    $region6: #{tpu_custom_call.1} parent=1 // loop_footer
      %s18 = sadd.s32 1, %s14
    $region7: #{tpu_custom_call.1} parent=1 // loop_footer_branch
      %13 = sbr.rel target = $region3
    $region8: #{tpu_custom_call.1} parent=1 // loop_exit
      _
    %959 = vsyncpa [#allocation3], 1
    %s960 = scalar_lea.sflag [#allocation3], 1
    %961 = vsyncpa %s960, 1

</llo_original>
